<compile_context>
chip_gen: v7x
topology: tpu7x:2x2x1
jax: 0.10.0
libtpu: 0.0.40
codegen_flags: <defaults>
</compile_context>

<pallas_src>
import jax
import jax.numpy as jnp
from jax.experimental import pallas as pl
from jax.experimental.pallas import tpu as pltpu


def _round_up(a: int, b: int) -> int:
    return ((a + b - 1) // b) * b


def _ffn_kernel(x_ref, w1_ref, b1_ref, w2_ref, b2_ref, o_ref):
    # x_ref: (tm, H) token tile. w1_ref/w2_ref: (H, H) bf16. b1/b2: (1, H) f32.
    x_f32 = x_ref[...].astype(jnp.float32)       # residual path stays f32
    x_bf16 = x_ref[...].astype(jnp.bfloat16)     # MXU operand

    # conv1 (1x1) + bias + ReLU, f32 accumulation on the MXU.
    h = jnp.dot(x_bf16, w1_ref[...], preferred_element_type=jnp.float32)
    h = jnp.maximum(h + b1_ref[...], 0.0)

    # conv2 (1x1): bias + residual fused into the epilogue (y = x + b2 + h@W2).
    y = x_f32 + b2_ref[...] + jnp.dot(
        h.astype(jnp.bfloat16), w2_ref[...], preferred_element_type=jnp.float32
    )
    o_ref[...] = y.astype(o_ref.dtype)


def prepare_ffn_params(w1, b1, w2, b2):
    """One-time weight preprocessing (hoist out of the hot path).

    w1, w2: PyTorch Conv1d kernel_size=1 weights, shape (H_out, H_in, 1).
    b1, b2: (H,) biases.
    Returns bf16 matmul weights (H_in, H_out) and f32 (1, H) biases.
    """
    w1m = jnp.transpose(w1[:, :, 0]).astype(jnp.bfloat16)
    w2m = jnp.transpose(w2[:, :, 0]).astype(jnp.bfloat16)
    b1m = b1.reshape(1, -1).astype(jnp.float32)
    b2m = b2.reshape(1, -1).astype(jnp.float32)
    return w1m, b1m, w2m, b2m


def _pick_row_tile(n_rows: int, row_tile: int) -> int:
    # Target >= 4 grid steps when there are enough rows (keeps the x/out DMA
    # pipeline deep and lets megacore split the 'parallel' axis on v7x), but
    # never exceed the 8-row-aligned total row count. Tiles are multiples of 8.
    target = _round_up(max(-(-n_rows // 4), 8), 256)
    tm = min(int(row_tile), target, _round_up(n_rows, 8))
    return max(8, (tm // 8) * 8)


def pointwise_ffn(x, w1m, b1m, w2m, b2m, *, row_tile=1024):
    """x: (B, L, H) activations; (w1m, b1m, w2m, b2m) from prepare_ffn_params.

    Returns (B, L, H) = conv2(relu(conv1(x))) + x (eval-mode, dropout = id),
    with the same dtype as x.
    """
    B, L, H = x.shape
    N = B * L
    itemsize = jnp.dtype(x.dtype).itemsize

    tm = _pick_row_tile(N, row_tile)

    # VMEM budget: double-buffered x and out tiles, ~3 f32 tile-sized
    # intermediates (x_f32 / h / y), resident weights (double-buffered by the
    # default pipeline), plus headroom for Mosaic internal scratch.
    weights_bytes = 2 * (H * H * 2) + 2 * (H * 4)

    def _vmem_est(t):
        return 4 * t * H * itemsize + 3 * t * H * 4 + 2 * weights_bytes + (4 << 20)

    while tm > 256 and _vmem_est(tm) > (56 << 20):
        tm = max(256, ((tm // 2) // 8) * 8)
    vmem_limit = int(min(max(_vmem_est(tm), 16 << 20), 56 << 20))

    x2 = x.reshape(N, H)
    grid_rows = pl.cdiv(N, tm)

    cost = pl.CostEstimate(
        flops=4 * N * H * H,                                   # two (N,H)@(H,H)
        transcendentals=0,
        bytes_accessed=2 * N * H * itemsize + weights_bytes,   # x read + out write + weights
    )

    out = pl.pallas_call(
        _ffn_kernel,
        out_shape=jax.ShapeDtypeStruct((N, H), x.dtype),
        grid_spec=pltpu.PrefetchScalarGridSpec(
            num_scalar_prefetch=0,
            grid=(grid_rows,),
            in_specs=[
                pl.BlockSpec((tm, H), lambda i: (i, 0)),   # x tile (pipelined)
                pl.BlockSpec((H, H), lambda i: (0, 0)),    # W1 (resident)
                pl.BlockSpec((1, H), lambda i: (0, 0)),    # b1
                pl.BlockSpec((H, H), lambda i: (0, 0)),    # W2
                pl.BlockSpec((1, H), lambda i: (0, 0)),    # b2
            ],
            out_specs=pl.BlockSpec((tm, H), lambda i: (i, 0)),
        ),
        compiler_params=pltpu.CompilerParams(
            dimension_semantics=("parallel",),
            vmem_limit_bytes=vmem_limit,
        ),
        cost_estimate=cost,
    )(x2, w1m, b1m, w2m, b2m)

    return out.reshape(B, L, H)


def _reference(x, w1, b1, w2, b2):
    # Pure-JAX f32 reference mirroring the PyTorch module (eval mode).
    xt = jnp.swapaxes(x, -1, -2)                                 # (B, H, L)
    h = jnp.einsum("oi,bil->bol", w1[:, :, 0], xt) + b1[None, :, None]
    h = jnp.maximum(h, 0.0)
    y = jnp.einsum("oi,bil->bol", w2[:, :, 0], h) + b2[None, :, None]
    return jnp.swapaxes(y, -1, -2) + x


if __name__ == "__main__":
    B, L, H = 2, 8, 32          # batch, sequence length, hidden_units
    key = jax.random.PRNGKey(0)
    kx, k1, k2, k3, k4 = jax.random.split(key, 5)

    x = jax.random.normal(kx, (B, L, H), dtype=jnp.float32)

    # Deterministic "Conv1d-like" init: U(-1/sqrt(fan_in), 1/sqrt(fan_in))
    bound = 1.0 / jnp.sqrt(jnp.float32(H))
    w1 = jax.random.uniform(k1, (H, H, 1), jnp.float32, -bound, bound)
    b1 = jax.random.uniform(k2, (H,), jnp.float32, -bound, bound)
    w2 = jax.random.uniform(k3, (H, H, 1), jnp.float32, -bound, bound)
    b2 = jax.random.uniform(k4, (H,), jnp.float32, -bound, bound)

    # One-time weight prep (hoisted out of the per-call hot path).
    params = prepare_ffn_params(w1, b1, w2, b2)

    out = pointwise_ffn(x, *params)
    out = jax.block_until_ready(out)

    ref = _reference(x, w1, b1, w2, b2)
    assert out.shape == (B, L, H)
    # bf16 MXU operands (f32 accumulation) -> compare vs f32 reference with a
    # tolerance that covers bf16 operand rounding (~1e-2 relative).
    assert jnp.allclose(out, ref, atol=3e-2, rtol=3e-2), "mismatch vs reference"

    print("KERNEL_OK")
</pallas_src>

<mosaic_0001>
module attributes {stable_mosaic.version = 11 : i64} {
  func.func @_ffn_kernel(%arg0: i32, %arg1: memref<16x32xf32, #tpu.memory_space<vmem>>, %arg2: memref<32x32xbf16, #tpu.memory_space<vmem>>, %arg3: memref<1x32xf32, #tpu.memory_space<vmem>>, %arg4: memref<32x32xbf16, #tpu.memory_space<vmem>>, %arg5: memref<1x32xf32, #tpu.memory_space<vmem>>, %arg6: memref<16x32xf32, #tpu.memory_space<vmem>>) attributes {dimension_semantics = [#tpu.dimension_semantics<parallel>], iteration_bounds = array<i64: 1>, scalar_prefetch = 0 : i64, scratch_operands = 0 : i64, tpu.core_type = #tpu.core_type<tc>, window_params = [{transform_indices = @transform_0, window_bounds = array<i64: 16, 32>}, {pipeline_mode = #tpu.pipeline_mode<synchronous>, transform_indices = @transform_1, window_bounds = array<i64: 32, 32>}, {pipeline_mode = #tpu.pipeline_mode<synchronous>, transform_indices = @transform_2, window_bounds = array<i64: 1, 32>}, {pipeline_mode = #tpu.pipeline_mode<synchronous>, transform_indices = @transform_3, window_bounds = array<i64: 32, 32>}, {pipeline_mode = #tpu.pipeline_mode<synchronous>, transform_indices = @transform_4, window_bounds = array<i64: 1, 32>}, {transform_indices = @transform_5, window_bounds = array<i64: 16, 32>}]} {
    %c0 = arith.constant 0 : index
    %c0_0 = arith.constant 0 : index
    %0 = vector.load %arg1[%c0, %c0_0] : memref<16x32xf32, #tpu.memory_space<vmem>>, vector<16x32xf32>
    %c0_1 = arith.constant 0 : index
    %c0_2 = arith.constant 0 : index
    %1 = vector.load %arg1[%c0_1, %c0_2] : memref<16x32xf32, #tpu.memory_space<vmem>>, vector<16x32xf32>
    %2 = arith.truncf %1 : vector<16x32xf32> to vector<16x32xbf16>
    %c0_3 = arith.constant 0 : index
    %c0_4 = arith.constant 0 : index
    %3 = vector.load %arg2[%c0_3, %c0_4] : memref<32x32xbf16, #tpu.memory_space<vmem>>, vector<32x32xbf16>
    %cst = arith.constant dense<0.000000e+00> : vector<16x32xf32>
    %4 = tpu.matmul %2, %3, %cst {dimension_numbers = #tpu.dot_dimension_numbers<[1], [0], [0], [1], [0, 0, 1, 1], [], []>} : vector<16x32xbf16>, vector<32x32xbf16>, vector<16x32xf32> -> vector<16x32xf32>
    %c0_5 = arith.constant 0 : index
    %c0_6 = arith.constant 0 : index
    %5 = vector.load %arg3[%c0_5, %c0_6] : memref<1x32xf32, #tpu.memory_space<vmem>>, vector<1x32xf32>
    %6 = vector.broadcast %5 : vector<1x32xf32> to vector<16x32xf32>
    %7 = arith.addf %4, %6 : vector<16x32xf32>
    %cst_7 = arith.constant 0.000000e+00 : f32
    %8 = vector.broadcast %cst_7 : f32 to vector<16x32xf32>
    %9 = arith.maximumf %7, %8 : vector<16x32xf32>
    %c0_8 = arith.constant 0 : index
    %c0_9 = arith.constant 0 : index
    %10 = vector.load %arg5[%c0_8, %c0_9] : memref<1x32xf32, #tpu.memory_space<vmem>>, vector<1x32xf32>
    %11 = vector.broadcast %10 : vector<1x32xf32> to vector<16x32xf32>
    %12 = arith.addf %0, %11 : vector<16x32xf32>
    %13 = arith.truncf %9 : vector<16x32xf32> to vector<16x32xbf16>
    %c0_10 = arith.constant 0 : index
    %c0_11 = arith.constant 0 : index
    %14 = vector.load %arg4[%c0_10, %c0_11] : memref<32x32xbf16, #tpu.memory_space<vmem>>, vector<32x32xbf16>
    %cst_12 = arith.constant dense<0.000000e+00> : vector<16x32xf32>
    %15 = tpu.matmul %13, %14, %cst_12 {dimension_numbers = #tpu.dot_dimension_numbers<[1], [0], [0], [1], [0, 0, 1, 1], [], []>} : vector<16x32xbf16>, vector<32x32xbf16>, vector<16x32xf32> -> vector<16x32xf32>
    %16 = arith.addf %12, %15 : vector<16x32xf32>
    %c0_13 = arith.constant 0 : index
    %c0_14 = arith.constant 0 : index
    %17 = vector.load %arg6[%c0_13, %c0_14] : memref<16x32xf32, #tpu.memory_space<vmem>>, vector<16x32xf32>
    tpu.vector_store %arg6[%c0_13, %c0_14], %16 {strides = array<i32>} : memref<16x32xf32, #tpu.memory_space<vmem>>, vector<16x32xf32>,
    return
  }
  func.func @transform_0(%arg0: i32) -> (i32, i32) {
    %c0_i32 = arith.constant 0 : i32
    %c0_i32_0 = arith.constant 0 : i32
    return %arg0, %c0_i32 : i32, i32
  }
  func.func @transform_1(%arg0: i32) -> (i32, i32) {
    %c0_i32 = arith.constant 0 : i32
    %c0_i32_0 = arith.constant 0 : i32
    %c0_i32_1 = arith.constant 0 : i32
    return %c0_i32, %c0_i32_0 : i32, i32
  }
  func.func @transform_2(%arg0: i32) -> (i32, i32) {
    %c0_i32 = arith.constant 0 : i32
    %c0_i32_0 = arith.constant 0 : i32
    %c0_i32_1 = arith.constant 0 : i32
    return %c0_i32, %c0_i32_0 : i32, i32
  }
  func.func @transform_3(%arg0: i32) -> (i32, i32) {
    %c0_i32 = arith.constant 0 : i32
    %c0_i32_0 = arith.constant 0 : i32
    %c0_i32_1 = arith.constant 0 : i32
    return %c0_i32, %c0_i32_0 : i32, i32
  }
  func.func @transform_4(%arg0: i32) -> (i32, i32) {
    %c0_i32 = arith.constant 0 : i32
    %c0_i32_0 = arith.constant 0 : i32
    %c0_i32_1 = arith.constant 0 : i32
    return %c0_i32, %c0_i32_0 : i32, i32
  }
  func.func @transform_5(%arg0: i32) -> (i32, i32) {
    %c0_i32 = arith.constant 0 : i32
    %c0_i32_0 = arith.constant 0 : i32
    return %arg0, %c0_i32 : i32, i32
  }
}

</mosaic_0001>

<llo_original>
// kernel: tpu_custom_call.1
$region0: #{tpu_custom_call.1}
  #allocation0 [shape = 'u32[]', space=smem, size = 0x4, offset = 0x4, fixed_abs, tag = 'smem constant byte address 0x4 - core index']
  #allocation1 [shape = 'u32[144,128]{1,0:T(1,128)}', space=vmem, size = 0x12000, scoped, tag = 'internal scratch']
  %s0 = inlined_call_operand.hbm [shape: f32[16,32], index: 0, kind: input, shape index: {}]
  %s1 = inlined_call_operand.hbm [shape: bf16[32,32], index: 1, kind: input, shape index: {}]
  %s2 = inlined_call_operand.vmem [shape: f32[1,32], index: 2, kind: input, shape index: {}]
  %s3 = inlined_call_operand.hbm [shape: bf16[32,32], index: 3, kind: input, shape index: {}]
  %s4 = inlined_call_operand.vmem [shape: f32[1,32], index: 4, kind: input, shape index: {}]
  %s5 = inlined_call_operand.hbm [shape: f32[16,32], index: 5, kind: output, shape index: {}]
  %s6 = sld [smem:[#allocation0]]
  $region42: #{tpu_custom_call.1} parent=0
    _
  %s8 = ssub.s32 1, %s6
  %s9 = scalar_select 0, %s8, %s6
  $region1: #{tpu_custom_call.1} parent=0
    #allocation2 [shape = 'u8[8192]{0}', space=vmem, size = 0x2000, scoped, tag = 'input window, operand 0, single buffered']
    #allocation3 [shape = 's32[1]{0}', space=sflag, size = 0x4, scoped, tag = 'scoped memory for tpu_custom_call.1']
    #allocation4 [shape = 's32[1]{0}', space=sflag, size = 0x4, scoped, tag = 'scoped memory for tpu_custom_call.1']
    #allocation5 [shape = 'u8[8192]{0}', space=vmem, size = 0x2000, scoped, tag = 'input window, operand 1, single buffered']
    #allocation6 [shape = 's32[1]{0}', space=sflag, size = 0x4, scoped, tag = 'scoped memory for tpu_custom_call.1']
    #allocation7 [shape = 'u8[8192]{0}', space=vmem, size = 0x2000, scoped, tag = 'input window, operand 3, single buffered']
    #allocation8 [shape = 'u8[8192]{0}', space=vmem, size = 0x2000, scoped, tag = 'output window, operand 0, single buffered']
    %10 = vsyncpa [#allocation3], 0
    %11 = vsyncpa [#allocation6], 0
    %12 = vsyncpa [#allocation4], 0
    // Predicated region
    $region2: #{tpu_custom_call.1} parent=1 // pred_check
      _
    $region3: #{tpu_custom_call.1} parent=1 // pred_check_branch
      %14 = sbr.rel (0) target = $region5
    $region4: #{tpu_custom_call.1} parent=1 // pred_region
      %s16 = ssub.s32 256, 256
      %17 = vsyncadd [#allocation3], %s16
      %s18 = sshll.u32 [#allocation2], 4
      %s19 = int_to_ptr.vmem [resolvable:$true] %s18
      %24 = dma.hbm_to_vmem [thread:$0]  %s0, 256, %s19, [#allocation3], 128, 128, 8
    $region5: #{tpu_custom_call.1} parent=1 // pred_fallthru
      _
    // Predicated region
    $region6: #{tpu_custom_call.1} parent=1 // pred_check
      _
    $region7: #{tpu_custom_call.1} parent=1 // pred_check_branch
      %26 = sbr.rel (0) target = $region9
    $region8: #{tpu_custom_call.1} parent=1 // pred_region
      %s28 = ssub.s32 256, 256
      %29 = vsyncadd [#allocation6], %s28
      %s30 = sshll.u32 [#allocation5], 4
      %s31 = int_to_ptr.vmem [resolvable:$true] %s30
      %36 = dma.hbm_to_vmem [thread:$0]  %s1, 256, %s31, [#allocation6], 64, 64, 4
    $region9: #{tpu_custom_call.1} parent=1 // pred_fallthru
      _
    // Predicated region
    $region10: #{tpu_custom_call.1} parent=1 // pred_check
      _
    $region11: #{tpu_custom_call.1} parent=1 // pred_check_branch
      %38 = sbr.rel (0) target = $region13
    $region12: #{tpu_custom_call.1} parent=1 // pred_region
      _
    $region13: #{tpu_custom_call.1} parent=1 // pred_fallthru
      _
    // Predicated region
    $region14: #{tpu_custom_call.1} parent=1 // pred_check
      _
    $region15: #{tpu_custom_call.1} parent=1 // pred_check_branch
      %40 = sbr.rel (0) target = $region17
    $region16: #{tpu_custom_call.1} parent=1 // pred_region
      %s42 = ssub.s32 256, 256
      %43 = vsyncadd [#allocation6], %s42
      %s44 = sshll.u32 [#allocation7], 4
      %s45 = int_to_ptr.vmem [resolvable:$true] %s44
      %50 = dma.hbm_to_vmem [thread:$0]  %s3, 256, %s45, [#allocation6], 64, 64, 4
    $region17: #{tpu_custom_call.1} parent=1 // pred_fallthru
      _
    // Predicated region
    $region18: #{tpu_custom_call.1} parent=1 // pred_check
      _
    $region19: #{tpu_custom_call.1} parent=1 // pred_check_branch
      %52 = sbr.rel (0) target = $region21
    $region20: #{tpu_custom_call.1} parent=1 // pred_region
      _
    $region21: #{tpu_custom_call.1} parent=1 // pred_fallthru
      _
    // Predicated region
    $region22: #{tpu_custom_call.1} parent=1 // pred_check
      _
    $region23: #{tpu_custom_call.1} parent=1 // pred_check_branch
      %54 = sbr.rel (0) target = $region25
    $region24: #{tpu_custom_call.1} parent=1 // pred_region
      %55 = dma.done [#allocation3], 256
    $region25: #{tpu_custom_call.1} parent=1 // pred_fallthru
      _
    // Predicated region
    $region26: #{tpu_custom_call.1} parent=1 // pred_check
      _
    $region27: #{tpu_custom_call.1} parent=1 // pred_check_branch
      %57 = sbr.rel (0) target = $region29
    $region28: #{tpu_custom_call.1} parent=1 // pred_region
      %58 = dma.done [#allocation6], 256
    $region29: #{tpu_custom_call.1} parent=1 // pred_fallthru
      _
    // Predicated region
    $region30: #{tpu_custom_call.1} parent=1 // pred_check
      _
    $region31: #{tpu_custom_call.1} parent=1 // pred_check_branch
      %60 = sbr.rel (0) target = $region33
    $region32: #{tpu_custom_call.1} parent=1 // pred_region
      %61 = dma.done [#allocation6], 256
    $region33: #{tpu_custom_call.1} parent=1 // pred_fallthru
      _
    %v63 = vld [vmem:[#allocation2] sm:$0xff]
    %v64 = vld [vmem:[#allocation2 + $0x8] sm:$0xff]
    %v65 = vpack.c.bf16 %v64, %v63
    %v66 = vld [vmem:[#allocation5] sm:$0xf]
    %v67 = vld [vmem:[#allocation5 + $0x4] sm:$0xf]
    %v68 = vld [vmem:[#allocation5 + $0x8] sm:$0xf]
    %v69 = vld [vmem:[#allocation5 + $0xc] sm:$0xf]
    %v70 = vld [vmem:[%s2] sm:$0x1]
    %v72 = vlaneseq
    %v73 = vshrl.u32 %v72, 7
    %v74 = vsub.s32 0, %v73
    %v75 = vrot.slane %v70, %v74
    %v81 = vunpack.c.l.b16 %v66
    %v82 = vunpack.c.l.b16 %v67
    %v83 = vunpack.c.l.b16 %v68
    %v84 = vunpack.c.l.b16 %v69
    %v85 = vpack.c.b16 %v82, %v81
    %v86 = vpack.c.b16 %v84, %v83
    %vm89 = vcmask 261120
    %v91 = vsel %vm89, %v65, 0
    %93 = vmatprep.subr.bf16.mxu0 0
    %94 = vmatpush1.bf16.msra.mxu0 %v85
    %95 = vmatprep.subr.bf16.mxu0 0
    %96 = vmatpush1.bf16.msra.mxu0 %v86
    %97 = vmatprep.subr.bf16.mxu0 0
    %98 = vmatpush1.bf16.msra.mxu0 0
    %99 = vmatprep.subr.bf16.mxu0 0
    %100 = vmatpush1.bf16.msra.mxu0 0
    %101 = vmatprep.subr.bf16.mxu0 0
    %102 = vmatpush1.bf16.msra.mxu0 0
    %103 = vmatprep.subr.bf16.mxu0 0
    %104 = vmatpush1.bf16.msra.mxu0 0
    %105 = vmatprep.subr.bf16.mxu0 0
    %106 = vmatpush1.bf16.msra.mxu0 0
    %107 = vmatprep.subr.bf16.mxu0 0
    %108 = vmatpush1.bf16.msra.mxu0 0
    %109 = vmatprep.subr.bf16.mxu0 0
    %110 = vmatpush1.bf16.msra.mxu0 0
    %111 = vmatprep.subr.bf16.mxu0 0
    %112 = vmatpush1.bf16.msra.mxu0 0
    %113 = vmatprep.subr.bf16.mxu0 0
    %114 = vmatpush1.bf16.msra.mxu0 0
    %115 = vmatprep.subr.bf16.mxu0 0
    %116 = vmatpush1.bf16.msra.mxu0 0
    %117 = vmatprep.subr.bf16.mxu0 0
    %118 = vmatpush1.bf16.msra.mxu0 0
    %119 = vmatprep.subr.bf16.mxu0 0
    %120 = vmatpush1.bf16.msra.mxu0 0
    %121 = vmatprep.subr.bf16.mxu0 0
    %122 = vmatpush1.bf16.msra.mxu0 0
    %123 = vmatprep.subr.bf16.mxu0 0
    %124 = vmatpush1.bf16.msra.mxu0 0
    %125 = vmatprep.mubr.bf16.mxu0 0
    %126 = vmatmul.mubr.bf16.gmra.mrb[0].mxu0 %v91
    %v127 = vpop.f32.mrb[0].mxu0
    %v128 = vadd.f32 %v75, %v127
    %v129 = vpop.f32.mrb[0].mxu0
    %v130 = vpop.f32.mrb[0].mxu0
    %v131 = vadd.f32 %v75, %v130
    %v132 = vpop.f32.mrb[0].mxu0
    %133 = vdwg.mxu0
    %v134 = vmax.f32 %v128, 0.0
    %v135 = vmax.f32 %v131, 0.0
    %v136 = vld [vmem:[%s4] sm:$0x1]
    %v138 = vlaneseq
    %v139 = vshrl.u32 %v138, 7
    %v140 = vsub.s32 0, %v139
    %v141 = vrot.slane %v136, %v140
    %v143 = vadd.f32 %v63, %v141
    %v144 = vadd.f32 %v64, %v141
    %v145 = vpack.c.bf16 %v135, %v134
    %v146 = vld [vmem:[#allocation7] sm:$0xf]
    %v147 = vld [vmem:[#allocation7 + $0x4] sm:$0xf]
    %v148 = vld [vmem:[#allocation7 + $0x8] sm:$0xf]
    %v149 = vld [vmem:[#allocation7 + $0xc] sm:$0xf]
    %v154 = vunpack.c.l.b16 %v146
    %v155 = vunpack.c.l.b16 %v147
    %v156 = vunpack.c.l.b16 %v148
    %v157 = vunpack.c.l.b16 %v149
    %v158 = vpack.c.b16 %v155, %v154
    %v159 = vpack.c.b16 %v157, %v156
    %v163 = vsel %vm89, %v145, 0
    %165 = vmatprep.subr.bf16.mxu0 0
    %166 = vmatpush1.bf16.msra.mxu0 %v158
    %167 = vmatprep.subr.bf16.mxu0 0
    %168 = vmatpush1.bf16.msra.mxu0 %v159
    %169 = vmatprep.subr.bf16.mxu0 0
    %170 = vmatpush1.bf16.msra.mxu0 0
    %171 = vmatprep.subr.bf16.mxu0 0
    %172 = vmatpush1.bf16.msra.mxu0 0
    %173 = vmatprep.subr.bf16.mxu0 0
    %174 = vmatpush1.bf16.msra.mxu0 0
    %175 = vmatprep.subr.bf16.mxu0 0
    %176 = vmatpush1.bf16.msra.mxu0 0
    %177 = vmatprep.subr.bf16.mxu0 0
    %178 = vmatpush1.bf16.msra.mxu0 0
    %179 = vmatprep.subr.bf16.mxu0 0
    %180 = vmatpush1.bf16.msra.mxu0 0
    %181 = vmatprep.subr.bf16.mxu0 0
    %182 = vmatpush1.bf16.msra.mxu0 0
    %183 = vmatprep.subr.bf16.mxu0 0
    %184 = vmatpush1.bf16.msra.mxu0 0
    %185 = vmatprep.subr.bf16.mxu0 0
    %186 = vmatpush1.bf16.msra.mxu0 0
    %187 = vmatprep.subr.bf16.mxu0 0
    %188 = vmatpush1.bf16.msra.mxu0 0
    %189 = vmatprep.subr.bf16.mxu0 0
    %190 = vmatpush1.bf16.msra.mxu0 0
    %191 = vmatprep.subr.bf16.mxu0 0
    %192 = vmatpush1.bf16.msra.mxu0 0
    %193 = vmatprep.subr.bf16.mxu0 0
    %194 = vmatpush1.bf16.msra.mxu0 0
    %195 = vmatprep.subr.bf16.mxu0 0
    %196 = vmatpush1.bf16.msra.mxu0 0
    %197 = vmatprep.mubr.bf16.mxu0 0
    %198 = vmatmul.mubr.bf16.gmra.mrb[0].mxu0 %v163
    %v199 = vpop.f32.mrb[0].mxu0
    %v200 = vadd.f32 0.0, %v199
    %v201 = vpop.f32.mrb[0].mxu0
    %v202 = vpop.f32.mrb[0].mxu0
    %v203 = vadd.f32 0.0, %v202
    %v204 = vpop.f32.mrb[0].mxu0
    %205 = vdwg.mxu0
    %v206 = vadd.f32 %v143, %v200
    %v207 = vadd.f32 %v144, %v203
    %208 = vst.msk [vmem:[#allocation8] sm:$0xff] %vm89, %v206
    %209 = vst.msk [vmem:[#allocation8 + $0x8] sm:$0xff] %vm89, %v207
    // Predicated region
    $region34: #{tpu_custom_call.1} parent=1 // pred_check
      _
    $region35: #{tpu_custom_call.1} parent=1 // pred_check_branch
      %211 = sbr.rel (0) target = $region37
    $region36: #{tpu_custom_call.1} parent=1 // pred_region
      %s213 = ssub.s32 256, 256
      %214 = vsyncadd [#allocation4], %s213
      %s215 = sshll.u32 [#allocation8], 4
      %s216 = int_to_ptr.vmem [resolvable:$true] %s215
      %221 = dma.vmem_to_hbm [thread:$0]  %s216, 256, %s5, [#allocation4], 128, 128, 8
    $region37: #{tpu_custom_call.1} parent=1 // pred_fallthru
      _
    // Predicated region
    $region38: #{tpu_custom_call.1} parent=1 // pred_check
      _
    $region39: #{tpu_custom_call.1} parent=1 // pred_check_branch
      %223 = sbr.rel (0) target = $region41
    $region40: #{tpu_custom_call.1} parent=1 // pred_region
      %224 = dma.done [#allocation4], 256
    $region41: #{tpu_custom_call.1} parent=1 // pred_fallthru
      _
    %225 = vsyncpa [#allocation3], 1
    %226 = vsyncpa [#allocation6], 1
    %227 = vsyncpa [#allocation4], 1

</llo_original>
